<compile_context>
chip_gen: v7x
topology: tpu7x:2x2x1
jax: 0.10.0
libtpu: 0.0.40
codegen_flags: <defaults>
</compile_context>

<pallas_src>
import jax
import jax.numpy as jnp
from jax.experimental import pallas as pl
from jax.experimental.pallas import tpu as pltpu


# ----------------------------------------------------------------------------
# Kernel: streaming per-row spatial L2 norm of (x0 - x1).
#   x0_ref / x1_ref : (TILE_ROWS, HW) native dtype   (ragged last block OK)
#   y_ref           : (TILE_ROWS, 1)  f32
# ----------------------------------------------------------------------------
def _row_norm_kernel(x0_ref, x1_ref, y_ref):
    a = x0_ref[...].astype(jnp.float32)
    b = x1_ref[...].astype(jnp.float32)
    d = a - b
    # Per-row reduction: rows are independent, so any garbage in the OOB rows
    # of a ragged last block stays in rows that are masked off on writeback.
    y_ref[...] = jnp.sqrt(jnp.sum(d * d, axis=-1, keepdims=True))


def _vmem_budgets():
    """(per-input-tile byte budget, vmem_limit_bytes) sized for this chip."""
    try:
        cap = int(pltpu.get_tpu_info().vmem_capacity_bytes)
    except Exception:
        cap = 64 * 1024 * 1024           # conservative fallback (v7x-sized)
    if cap >= 128 * 1024 * 1024:         # v5e / v6e (128 MiB physical)
        # 2 inputs x 2 pipeline buffers x 8 MiB = 32 MiB << 64 MiB limit.
        return 8 * 1024 * 1024, 64 * 1024 * 1024
    # v7x (64 MiB physical): 2 inputs x 2 pipeline buffers x 6 MiB = 24 MiB.
    return 6 * 1024 * 1024, 40 * 1024 * 1024


def _choose_tile_rows(rows, hw, itemsize, budget_bytes):
    """Largest multiple-of-8 row tile under the VMEM budget, capped near
    ceil(rows/4) so mid-sized problems still get >= ~4 grid blocks (two per
    v7x TensorCore) and DMA/compute overlap everywhere."""
    bytes_per_row = max(1, hw * itemsize)
    budget_rows = max(8, (budget_bytes // bytes_per_row) // 8 * 8)
    quarter_rows = max(8, ((-(-rows // 4)) + 7) // 8 * 8)   # ceil(rows/4), mult of 8
    tile = min(budget_rows, quarter_rows)
    if rows <= tile:
        return rows                       # single full-extent block (legal layout)
    return tile


def regression_loss(x0, x1, output1, output2):
    """x0, x1: (B, C, H, W); output1, output2: (B, D). Returns scalar f32 loss."""
    B, C, H, W = x0.shape
    HW = H * W
    rows = B * C

    # Flatten NCHW -> (B*C, HW): contiguous reshape, keeps native dtype.
    x0f = x0.reshape(rows, HW)
    x1f = x1.reshape(rows, HW)
    itemsize = jnp.dtype(x0f.dtype).itemsize

    tile_budget, vmem_limit = _vmem_budgets()
    tile_rows = _choose_tile_rows(rows, HW, itemsize, tile_budget)
    num_blocks = pl.cdiv(rows, tile_rows)    # ragged last block handled by Pallas

    y = pl.pallas_call(
        _row_norm_kernel,
        out_shape=jax.ShapeDtypeStruct((rows, 1), jnp.float32),
        grid_spec=pltpu.PrefetchScalarGridSpec(
            num_scalar_prefetch=0,
            grid=(num_blocks,),
            in_specs=[
                pl.BlockSpec((tile_rows, HW), lambda i: (i, 0)),
                pl.BlockSpec((tile_rows, HW), lambda i: (i, 0)),
            ],
            out_specs=pl.BlockSpec((tile_rows, 1), lambda i: (i, 0)),
        ),
        compiler_params=pltpu.CompilerParams(
            dimension_semantics=("parallel",),
            vmem_limit_bytes=vmem_limit,
        ),
        cost_estimate=pl.CostEstimate(
            flops=3 * rows * HW,
            transcendentals=rows,
            bytes_accessed=2 * rows * HW * itemsize + rows * 4,
        ),
    )(x0f, x1f)

    # Tiny epilogue on (B, C) / (B, D) data: plain jnp (XLA fuses it for free;
    # saves a second kernel launch, per perf review).
    y_bc = y.reshape(B, C)
    target_diff = jnp.sum(y_bc, axis=1) * (1.0 / 16.0)   # /16 per PyTorch source (not /C)
    od = output1.astype(jnp.float32) - output2.astype(jnp.float32)
    dist = jnp.sqrt(jnp.sum(od * od, axis=1))
    return jnp.mean(jnp.abs(dist - target_diff))


if __name__ == "__main__":
    key = jax.random.PRNGKey(0)
    k0, k1, k2, k3 = jax.random.split(key, 4)

    B, C, H, W, D = 2, 4, 16, 16, 32
    x0 = jax.random.normal(k0, (B, C, H, W), dtype=jnp.float32)
    x1 = jax.random.normal(k1, (B, C, H, W), dtype=jnp.float32)
    out1 = jax.random.normal(k2, (B, D), dtype=jnp.float32)
    out2 = jax.random.normal(k3, (B, D), dtype=jnp.float32)

    loss = jax.jit(regression_loss)(x0, x1, out1, out2)
    jax.block_until_ready(loss)

    # Pure-JAX reference of the same semantics (PyTorch RegressionLoss).
    diff = x0 - x1
    y_ref = jnp.sqrt(jnp.sum(diff ** 2, axis=(2, 3)))
    target = jnp.sum(y_ref, axis=1) / 16.0
    dist = jnp.sqrt(jnp.sum((out1 - out2) ** 2, axis=1))
    ref = jnp.mean(jnp.abs(dist - target))
    assert jnp.allclose(loss, ref, rtol=1e-5, atol=1e-5), (loss, ref)

    print("KERNEL_OK")
</pallas_src>

<mosaic_0001>
module attributes {stable_mosaic.version = 11 : i64} {
  func.func @_row_norm_kernel(%arg0: i32, %arg1: memref<8x256xf32, #tpu.memory_space<vmem>>, %arg2: memref<8x256xf32, #tpu.memory_space<vmem>>, %arg3: memref<8x1xf32, #tpu.memory_space<vmem>>) attributes {dimension_semantics = [#tpu.dimension_semantics<parallel>], iteration_bounds = array<i64: 1>, scalar_prefetch = 0 : i64, scratch_operands = 0 : i64, tpu.core_type = #tpu.core_type<tc>, window_params = [{transform_indices = @transform_0, window_bounds = array<i64: 8, 256>}, {transform_indices = @transform_1, window_bounds = array<i64: 8, 256>}, {transform_indices = @transform_2, window_bounds = array<i64: 8, 1>}]} {
    %c0 = arith.constant 0 : index
    %c0_0 = arith.constant 0 : index
    %0 = vector.load %arg1[%c0, %c0_0] : memref<8x256xf32, #tpu.memory_space<vmem>>, vector<8x256xf32>
    %c0_1 = arith.constant 0 : index
    %c0_2 = arith.constant 0 : index
    %1 = vector.load %arg2[%c0_1, %c0_2] : memref<8x256xf32, #tpu.memory_space<vmem>>, vector<8x256xf32>
    %2 = arith.subf %0, %1 : vector<8x256xf32>
    %3 = arith.mulf %2, %2 : vector<8x256xf32>
    %cst = arith.constant dense<0.000000e+00> : vector<8xf32>
    %4 = vector.multi_reduction <add>, %3, %cst [1] : vector<8x256xf32> to vector<8xf32>
    %5 = vector.shape_cast %4 : vector<8xf32> to vector<8x1xf32>
    %6 = math.sqrt %5 : vector<8x1xf32>
    %c0_3 = arith.constant 0 : index
    %c0_4 = arith.constant 0 : index
    %7 = vector.load %arg3[%c0_3, %c0_4] : memref<8x1xf32, #tpu.memory_space<vmem>>, vector<8x1xf32>
    tpu.vector_store %arg3[%c0_3, %c0_4], %6 {strides = array<i32>} : memref<8x1xf32, #tpu.memory_space<vmem>>, vector<8x1xf32>,
    return
  }
  func.func @transform_0(%arg0: i32) -> (i32, i32) {
    %c0_i32 = arith.constant 0 : i32
    %c0_i32_0 = arith.constant 0 : i32
    return %arg0, %c0_i32 : i32, i32
  }
  func.func @transform_1(%arg0: i32) -> (i32, i32) {
    %c0_i32 = arith.constant 0 : i32
    %c0_i32_0 = arith.constant 0 : i32
    return %arg0, %c0_i32 : i32, i32
  }
  func.func @transform_2(%arg0: i32) -> (i32, i32) {
    %c0_i32 = arith.constant 0 : i32
    %c0_i32_0 = arith.constant 0 : i32
    return %arg0, %c0_i32 : i32, i32
  }
}

</mosaic_0001>

<llo_original>
// kernel: regression_loss.1
$region0: #{regression_loss.1}
  #allocation0 [shape = 'u32[]', space=smem, size = 0x4, offset = 0x4, fixed_abs, tag = 'smem constant byte address 0x4 - core index']
  #allocation1 [shape = 'u32[144,128]{1,0:T(1,128)}', space=vmem, size = 0x12000, scoped, tag = 'internal scratch']
  %s0 = inlined_call_operand.vmem [shape: f32[8,256], index: 0, kind: input, shape index: {}]
  %s1 = inlined_call_operand.vmem [shape: f32[8,256], index: 1, kind: input, shape index: {}]
  %s2 = inlined_call_operand.vmem [shape: f32[8,1], index: 2, kind: output, shape index: {}]
  %s3 = sld [smem:[#allocation0]]
  $region18: #{regression_loss.1} parent=0
    _
  %s5 = ssub.s32 1, %s3
  %s6 = scalar_select 0, %s5, %s3
  // Predicated region
  $region2: #{regression_loss.1} parent=0 // pred_check
    _
  $region3: #{regression_loss.1} parent=0 // pred_check_branch
    %8 = sbr.rel (0) target = $region5
  $region4: #{regression_loss.1} parent=0 // pred_region
    _
  $region5: #{regression_loss.1} parent=0 // pred_fallthru
    _
  // Predicated region
  $region6: #{regression_loss.1} parent=0 // pred_check
    _
  $region7: #{regression_loss.1} parent=0 // pred_check_branch
    %10 = sbr.rel (0) target = $region9
  $region8: #{regression_loss.1} parent=0 // pred_region
    _
  $region9: #{regression_loss.1} parent=0 // pred_fallthru
    _
  %v11 = vld [vmem:[%s0] sm:$0xff]
  %v12 = vld [vmem:[%s0 + $0x8] sm:$0xff]
  %v13 = vld [vmem:[%s1] sm:$0xff]
  %v14 = vld [vmem:[%s1 + $0x8] sm:$0xff]
  %v15 = vsub.f32 %v11, %v13
  %v16 = vsub.f32 %v12, %v14
  %v17 = vmul.f32 %v15, %v15
  %v18 = vmul.f32 %v16, %v16
  %v19 = vadd.f32 %v17, %v18
  %20 = vadd.xlane.f32.xlu0 %v19
  %v21 = vpop.xlane.xlu0 %20
  %v22 = vrsqrt.pop %v21
  %v23 = vmul.f32 %v21, %v22
  %vm24 = vcmp.eq.f32.partialorder %v21, inf
  %v25 = vsel %vm24, %v21, %v23
  %vm26 = vcmp.eq.f32.partialorder %v21, 0.0
  %v27 = vand.u32 %v21, 2147483648
  %v28 = vsel %vm26, %v27, %v25
  %vm29 = vcmask 7168
  %30 = vst.msk [vmem:[%s2] sm:$0xff] %vm29, %v28
  // Predicated region
  $region10: #{regression_loss.1} parent=0 // pred_check
    _
  $region11: #{regression_loss.1} parent=0 // pred_check_branch
    %32 = sbr.rel (0) target = $region13
  $region12: #{regression_loss.1} parent=0 // pred_region
    _
  $region13: #{regression_loss.1} parent=0 // pred_fallthru
    _
  // Predicated region
  $region14: #{regression_loss.1} parent=0 // pred_check
    _
  $region15: #{regression_loss.1} parent=0 // pred_check_branch
    %34 = sbr.rel (0) target = $region17
  $region16: #{regression_loss.1} parent=0 // pred_region
    _
  $region17: #{regression_loss.1} parent=0 // pred_fallthru
    _

</llo_original>
